<compile_context>
chip_gen: v7x
topology: tpu7x:2x2x1
jax: 0.10.0
libtpu: 0.0.40
codegen_flags: <defaults>
</compile_context>

<pallas_src>
import math

import jax
import jax.numpy as jnp
from jax.experimental import pallas as pl
from jax.experimental.pallas import tpu as pltpu

HIDDEN_SIZES = [128, 64, 64]
BN_EPS = 1e-5


# --------------------------------------------------------------------------------------
# Kernel: 4 feature-major matmuls (MXU) + bias + ReLU, both nets at once, all in VMEM.
# --------------------------------------------------------------------------------------
def _make_kernel(out_dims, compute_dtype):
    """out_dims = fused per-layer output widths, e.g. [256, 128, 128, 2]."""
    offs = [0]
    for d in out_dims:
        offs.append(offs[-1] + d)

    def kernel(x_ref, w1_ref, w2_ref, w3_ref, w4_ref, bias_ref, o_ref):
        b1 = bias_ref[offs[0]:offs[1], :]
        b2 = bias_ref[offs[1]:offs[2], :]
        b3 = bias_ref[offs[2]:offs[3], :]
        b4 = bias_ref[offs[3]:offs[4], :]
        # layers 1-3: Linear (BN already folded into W/b on host) + ReLU.
        # f32 accumulation always; bias add / ReLU in f32 (works on v5e too);
        # dropout layers are identity in eval mode.
        h = jnp.dot(w1_ref[...], x_ref[...], preferred_element_type=jnp.float32) + b1
        h = jnp.maximum(h, 0.0).astype(compute_dtype)
        h = jnp.dot(w2_ref[...], h, preferred_element_type=jnp.float32) + b2
        h = jnp.maximum(h, 0.0).astype(compute_dtype)
        h = jnp.dot(w3_ref[...], h, preferred_element_type=jnp.float32) + b3
        h = jnp.maximum(h, 0.0).astype(compute_dtype)
        # layer 4: Linear only; block-diag weights write [mu ; pre_log_sigma] rows directly.
        o_ref[...] = (jnp.dot(w4_ref[...], h, preferred_element_type=jnp.float32)
                      + b4).astype(o_ref.dtype)

    return kernel


def synthetic_nn_lognormal_forward(src, fused_params, *, block_b=1024):
    """SyntheticNN(model_dist='lognormal').forward : (B, D_in) -> (B, 2)."""
    w1, w2, w3, w4, bias = fused_params
    B, d_in = src.shape
    compute_dtype = w1.dtype

    # feature-major input: batch becomes the lane (last) dim -> dense DMAs / stores.
    x_t = jnp.transpose(src).astype(compute_dtype)            # (d_in, B)

    # batch tile selection (lane dim): no host-side padding of x.
    if B > block_b:
        tb = max(128, (block_b // 128) * 128)                  # lane-dense multiple of 128
    elif B >= 256:
        # >=2 grid steps so ("parallel",) can shard the batch across TCs (v7x megacore).
        tb = pl.cdiv(pl.cdiv(B, 2), 128) * 128
    else:
        tb = B                                                 # whole small batch, 1 step
    grid = (pl.cdiv(B, tb),)

    out_dims = [w1.shape[0], w2.shape[0], w3.shape[0], w4.shape[0]]
    kernel = _make_kernel(out_dims, compute_dtype)

    def resident(a):  # whole-array VMEM-resident weight/bias (same block every step)
        return pl.BlockSpec(a.shape, lambda i: (0, 0))

    dims_chain = [d_in] + out_dims
    flops = 2 * B * sum(dims_chain[i] * dims_chain[i + 1] for i in range(4))
    w_bytes = sum(int(a.size) * a.dtype.itemsize for a in (w1, w2, w3, w4, bias))
    bytes_accessed = B * d_in * x_t.dtype.itemsize + B * out_dims[-1] * 4 + w_bytes

    out_t = pl.pallas_call(
        kernel,
        out_shape=jax.ShapeDtypeStruct((out_dims[-1], B), jnp.float32),
        grid=grid,
        in_specs=[
            pl.BlockSpec((d_in, tb), lambda i: (0, i)),        # x^T: tiled over batch lanes
            resident(w1), resident(w2), resident(w3), resident(w4),
            resident(bias),
        ],
        out_specs=pl.BlockSpec((out_dims[-1], tb), lambda i: (0, i)),
        compiler_params=pltpu.CompilerParams(
            dimension_semantics=("parallel",),
        ),
        cost_estimate=pl.CostEstimate(
            flops=flops, transcendentals=0, bytes_accessed=bytes_accessed),
    )(x_t, w1, w2, w3, w4, bias)

    return jnp.transpose(out_t)                                # (B, 2)


# --------------------------------------------------------------------------------------
# Host-side parameter prep: per-net raw params -> BN-folded, block-diag, transposed.
# --------------------------------------------------------------------------------------
def _xavier_uniform(key, fan_in, fan_out):
    limit = math.sqrt(6.0 / (fan_in + fan_out))
    # stored as (in, out): pre-transposed PyTorch (out, in) weight
    return jax.random.uniform(key, (fan_in, fan_out), jnp.float32, -limit, limit)


def init_deepnet_layers(key, d_in, d_out, hs):
    """Layers 0-2: (w, b, gamma, beta, run_mean, run_var); layer 3: (w, b)."""
    dims = [d_in, hs[0], hs[1], hs[2], d_out]
    layers = []
    for li in range(4):
        key, kw, kg, kb, km, kv = jax.random.split(key, 6)
        fin, fout = dims[li], dims[li + 1]
        w = _xavier_uniform(kw, fin, fout)
        b = jnp.full((fout,), 0.01, jnp.float32)
        if li < 3:
            gamma = jax.random.uniform(kg, (fout,), jnp.float32, 0.5, 1.5)
            beta = 0.1 * jax.random.normal(kb, (fout,), jnp.float32)
            mean = 0.1 * jax.random.normal(km, (fout,), jnp.float32)
            var = jax.random.uniform(kv, (fout,), jnp.float32, 0.5, 2.0)
            layers.append((w, b, gamma, beta, mean, var))
        else:
            layers.append((w, b))
    return layers


def _fold_bn(w, b, gamma, beta, mean, var):
    """Fold eval-mode BatchNorm1d into the preceding Linear."""
    scale = gamma * jax.lax.rsqrt(var + BN_EPS)
    shift = beta - mean * scale
    return w * scale[None, :], b * scale + shift


def _block_diag(wa, wb):
    ia, oa = wa.shape
    ib, ob = wb.shape
    out = jnp.zeros((ia + ib, oa + ob), wa.dtype)
    out = out.at[:ia, :oa].set(wa)
    out = out.at[ia:, oa:].set(wb)
    return out


def build_fused_params(mu_layers, sigma_layers, compute_dtype=jnp.float32):
    """Pack mu- and sigma-DeepNet params into 4 transposed fused weights + 1 packed bias."""
    # layer 1: shared input -> concatenate along output dim
    w1m, b1m = _fold_bn(*mu_layers[0])
    w1s, b1s = _fold_bn(*sigma_layers[0])
    W1, B1 = jnp.concatenate([w1m, w1s], axis=1), jnp.concatenate([b1m, b1s])
    # layers 2-3: block-diagonal (independent activations per net)
    w2m, b2m = _fold_bn(*mu_layers[1])
    w2s, b2s = _fold_bn(*sigma_layers[1])
    W2, B2 = _block_diag(w2m, w2s), jnp.concatenate([b2m, b2s])
    w3m, b3m = _fold_bn(*mu_layers[2])
    w3s, b3s = _fold_bn(*sigma_layers[2])
    W3, B3 = _block_diag(w3m, w3s), jnp.concatenate([b3m, b3s])
    # layer 4: no BN; block-diag so row 0 = mu, row 1 = pre_log_sigma (feature-major)
    w4m, b4m = mu_layers[3]
    w4s, b4s = sigma_layers[3]
    W4, B4 = _block_diag(w4m, w4s), jnp.concatenate([b4m, b4s])
    # feature-major weights: (out, in), optionally bf16 (f32 accumulation in-kernel)
    Wt = tuple(jnp.transpose(W).astype(compute_dtype) for W in (W1, W2, W3, W4))
    # all biases packed into one (sum_out, 1) f32 column vector, sliced in-kernel
    bias = jnp.concatenate([B1, B2, B3, B4])[:, None].astype(jnp.float32)
    return Wt + (bias,)


# --------------------------------------------------------------------------------------
# Pure-JAX reference (unfused, eval-mode) for a correctness check.
# --------------------------------------------------------------------------------------
def deepnet_reference(x, layers):
    h = x
    for li, layer in enumerate(layers):
        if li < 3:
            w, b, g, be, m, v = layer
            z = h @ w + b
            z = g * (z - m) / jnp.sqrt(v + BN_EPS) + be
            h = jnp.maximum(z, 0.0)
        else:
            w, b = layer
            h = h @ w + b
    return h


if __name__ == "__main__":
    D_IN = 32
    BATCH = 8

    key = jax.random.PRNGKey(0)
    k_x, k_mu, k_sigma = jax.random.split(key, 3)

    src = jax.random.normal(k_x, (BATCH, D_IN), jnp.float32)
    mu_layers = init_deepnet_layers(k_mu, D_IN, 1, HIDDEN_SIZES)
    sigma_layers = init_deepnet_layers(k_sigma, D_IN, 1, HIDDEN_SIZES)

    # reference: two unfused DeepNets + concat, eval-mode BN
    ref = jnp.concatenate(
        [deepnet_reference(src, mu_layers), deepnet_reference(src, sigma_layers)], axis=1
    )

    # f32 path (bit-equivalent up to reassociation)
    fused_f32 = build_fused_params(mu_layers, sigma_layers, jnp.float32)
    pred = jax.block_until_ready(synthetic_nn_lognormal_forward(src, fused_f32))
    assert pred.shape == (BATCH, 2), pred.shape
    assert pred.dtype == jnp.float32
    assert bool(jnp.all(jnp.isfinite(pred)))
    err_f32 = float(jnp.max(jnp.abs(pred - ref)))
    assert err_f32 < 1e-4, f"f32 mismatch vs reference: {err_f32}"

    # bf16 MXU path (f32 accumulation) — recommended on v6e/v7x; loose tolerance vs f32 ref
    fused_bf16 = build_fused_params(mu_layers, sigma_layers, jnp.bfloat16)
    pred_bf16 = jax.block_until_ready(synthetic_nn_lognormal_forward(src, fused_bf16))
    assert pred_bf16.shape == (BATCH, 2), pred_bf16.shape
    assert bool(jnp.all(jnp.isfinite(pred_bf16)))
    rel = float(jnp.max(jnp.abs(pred_bf16 - ref))) / (float(jnp.max(jnp.abs(ref))) + 1.0)
    assert rel < 5e-2, f"bf16 mismatch vs reference (relative): {rel}"

    print("KERNEL_OK")
</pallas_src>

<mosaic_0001>
module attributes {stable_mosaic.version = 11 : i64} {
  func.func @kernel(%arg0: i32, %arg1: memref<32x8xf32, #tpu.memory_space<vmem>>, %arg2: memref<256x32xf32, #tpu.memory_space<vmem>>, %arg3: memref<128x256xf32, #tpu.memory_space<vmem>>, %arg4: memref<128x128xf32, #tpu.memory_space<vmem>>, %arg5: memref<2x128xf32, #tpu.memory_space<vmem>>, %arg6: memref<514x1xf32, #tpu.memory_space<vmem>>, %arg7: memref<2x8xf32, #tpu.memory_space<vmem>>) attributes {dimension_semantics = [#tpu.dimension_semantics<parallel>], iteration_bounds = array<i64: 1>, scalar_prefetch = 0 : i64, scratch_operands = 0 : i64, tpu.core_type = #tpu.core_type<tc>, window_params = [{transform_indices = @transform_0, window_bounds = array<i64: 32, 8>}, {pipeline_mode = #tpu.pipeline_mode<synchronous>, transform_indices = @transform_1, window_bounds = array<i64: 256, 32>}, {pipeline_mode = #tpu.pipeline_mode<synchronous>, transform_indices = @transform_2, window_bounds = array<i64: 128, 256>}, {pipeline_mode = #tpu.pipeline_mode<synchronous>, transform_indices = @transform_3, window_bounds = array<i64: 128, 128>}, {pipeline_mode = #tpu.pipeline_mode<synchronous>, transform_indices = @transform_4, window_bounds = array<i64: 2, 128>}, {pipeline_mode = #tpu.pipeline_mode<synchronous>, transform_indices = @transform_5, window_bounds = array<i64: 514, 1>}, {transform_indices = @transform_6, window_bounds = array<i64: 2, 8>}]} {
    %c0 = arith.constant 0 : index
    %c0_0 = arith.constant 0 : index
    %0 = vector.load %arg6[%c0, %c0_0] : memref<514x1xf32, #tpu.memory_space<vmem>>, vector<256x1xf32>
    %c256 = arith.constant 256 : index
    %c0_1 = arith.constant 0 : index
    %1 = vector.load %arg6[%c256, %c0_1] : memref<514x1xf32, #tpu.memory_space<vmem>>, vector<128x1xf32>
    %c384 = arith.constant 384 : index
    %c0_2 = arith.constant 0 : index
    %2 = vector.load %arg6[%c384, %c0_2] : memref<514x1xf32, #tpu.memory_space<vmem>>, vector<128x1xf32>
    %c512 = arith.constant 512 : index
    %c0_3 = arith.constant 0 : index
    %3 = vector.load %arg6[%c512, %c0_3] : memref<514x1xf32, #tpu.memory_space<vmem>>, vector<2x1xf32>
    %c0_4 = arith.constant 0 : index
    %c0_5 = arith.constant 0 : index
    %4 = vector.load %arg2[%c0_4, %c0_5] : memref<256x32xf32, #tpu.memory_space<vmem>>, vector<256x32xf32>
    %c0_6 = arith.constant 0 : index
    %c0_7 = arith.constant 0 : index
    %5 = vector.load %arg1[%c0_6, %c0_7] : memref<32x8xf32, #tpu.memory_space<vmem>>, vector<32x8xf32>
    %cst = arith.constant dense<0.000000e+00> : vector<256x8xf32>
    %6 = tpu.matmul %4, %5, %cst {dimension_numbers = #tpu.dot_dimension_numbers<[1], [0], [0], [1], [0, 0, 1, 1], [], []>} : vector<256x32xf32>, vector<32x8xf32>, vector<256x8xf32> -> vector<256x8xf32>
    %7 = vector.broadcast %0 : vector<256x1xf32> to vector<256x8xf32>
    %8 = arith.addf %6, %7 : vector<256x8xf32>
    %cst_8 = arith.constant 0.000000e+00 : f32
    %9 = vector.broadcast %cst_8 : f32 to vector<256x8xf32>
    %10 = arith.maximumf %8, %9 : vector<256x8xf32>
    %c0_9 = arith.constant 0 : index
    %c0_10 = arith.constant 0 : index
    %11 = vector.load %arg3[%c0_9, %c0_10] : memref<128x256xf32, #tpu.memory_space<vmem>>, vector<128x256xf32>
    %cst_11 = arith.constant dense<0.000000e+00> : vector<128x8xf32>
    %12 = tpu.matmul %11, %10, %cst_11 {dimension_numbers = #tpu.dot_dimension_numbers<[1], [0], [0], [1], [0, 0, 1, 1], [], []>} : vector<128x256xf32>, vector<256x8xf32>, vector<128x8xf32> -> vector<128x8xf32>
    %13 = vector.broadcast %1 : vector<128x1xf32> to vector<128x8xf32>
    %14 = arith.addf %12, %13 : vector<128x8xf32>
    %cst_12 = arith.constant 0.000000e+00 : f32
    %15 = vector.broadcast %cst_12 : f32 to vector<128x8xf32>
    %16 = arith.maximumf %14, %15 : vector<128x8xf32>
    %c0_13 = arith.constant 0 : index
    %c0_14 = arith.constant 0 : index
    %17 = vector.load %arg4[%c0_13, %c0_14] : memref<128x128xf32, #tpu.memory_space<vmem>>, vector<128x128xf32>
    %cst_15 = arith.constant dense<0.000000e+00> : vector<128x8xf32>
    %18 = tpu.matmul %17, %16, %cst_15 {dimension_numbers = #tpu.dot_dimension_numbers<[1], [0], [0], [1], [0, 0, 1, 1], [], []>} : vector<128x128xf32>, vector<128x8xf32>, vector<128x8xf32> -> vector<128x8xf32>
    %19 = vector.broadcast %2 : vector<128x1xf32> to vector<128x8xf32>
    %20 = arith.addf %18, %19 : vector<128x8xf32>
    %cst_16 = arith.constant 0.000000e+00 : f32
    %21 = vector.broadcast %cst_16 : f32 to vector<128x8xf32>
    %22 = arith.maximumf %20, %21 : vector<128x8xf32>
    %c0_17 = arith.constant 0 : index
    %c0_18 = arith.constant 0 : index
    %23 = vector.load %arg5[%c0_17, %c0_18] : memref<2x128xf32, #tpu.memory_space<vmem>>, vector<2x128xf32>
    %cst_19 = arith.constant dense<0.000000e+00> : vector<2x8xf32>
    %24 = tpu.matmul %23, %22, %cst_19 {dimension_numbers = #tpu.dot_dimension_numbers<[1], [0], [0], [1], [0, 0, 1, 1], [], []>} : vector<2x128xf32>, vector<128x8xf32>, vector<2x8xf32> -> vector<2x8xf32>
    %25 = vector.broadcast %3 : vector<2x1xf32> to vector<2x8xf32>
    %26 = arith.addf %24, %25 : vector<2x8xf32>
    %c0_20 = arith.constant 0 : index
    %c0_21 = arith.constant 0 : index
    %27 = vector.load %arg7[%c0_20, %c0_21] : memref<2x8xf32, #tpu.memory_space<vmem>>, vector<2x8xf32>
    tpu.vector_store %arg7[%c0_20, %c0_21], %26 {strides = array<i32>} : memref<2x8xf32, #tpu.memory_space<vmem>>, vector<2x8xf32>,
    return
  }
  func.func @transform_0(%arg0: i32) -> (i32, i32) {
    %c0_i32 = arith.constant 0 : i32
    %c0_i32_0 = arith.constant 0 : i32
    return %c0_i32, %arg0 : i32, i32
  }
  func.func @transform_1(%arg0: i32) -> (i32, i32) {
    %c0_i32 = arith.constant 0 : i32
    %c0_i32_0 = arith.constant 0 : i32
    %c0_i32_1 = arith.constant 0 : i32
    return %c0_i32, %c0_i32_0 : i32, i32
  }
  func.func @transform_2(%arg0: i32) -> (i32, i32) {
    %c0_i32 = arith.constant 0 : i32
    %c0_i32_0 = arith.constant 0 : i32
    %c0_i32_1 = arith.constant 0 : i32
    return %c0_i32, %c0_i32_0 : i32, i32
  }
  func.func @transform_3(%arg0: i32) -> (i32, i32) {
    %c0_i32 = arith.constant 0 : i32
    %c0_i32_0 = arith.constant 0 : i32
    %c0_i32_1 = arith.constant 0 : i32
    return %c0_i32, %c0_i32_0 : i32, i32
  }
  func.func @transform_4(%arg0: i32) -> (i32, i32) {
    %c0_i32 = arith.constant 0 : i32
    %c0_i32_0 = arith.constant 0 : i32
    %c0_i32_1 = arith.constant 0 : i32
    return %c0_i32, %c0_i32_0 : i32, i32
  }
  func.func @transform_5(%arg0: i32) -> (i32, i32) {
    %c0_i32 = arith.constant 0 : i32
    %c0_i32_0 = arith.constant 0 : i32
    %c0_i32_1 = arith.constant 0 : i32
    return %c0_i32, %c0_i32_0 : i32, i32
  }
  func.func @transform_6(%arg0: i32) -> (i32, i32) {
    %c0_i32 = arith.constant 0 : i32
    %c0_i32_0 = arith.constant 0 : i32
    return %c0_i32, %arg0 : i32, i32
  }
}

</mosaic_0001>

<llo_original>
// kernel: tpu_custom_call.1
$region0: #{tpu_custom_call.1}
  #allocation0 [shape = 'u32[]', space=smem, size = 0x4, offset = 0x4, fixed_abs, tag = 'smem constant byte address 0x4 - core index']
  #allocation1 [shape = 'u32[144,128]{1,0:T(1,128)}', space=vmem, size = 0x12000, scoped, tag = 'internal scratch']
  %s0 = inlined_call_operand.vmem [shape: f32[32,8], index: 0, kind: input, shape index: {}]
  %s1 = inlined_call_operand.vmem [shape: f32[256,32], index: 1, kind: input, shape index: {}]
  %s2 = inlined_call_operand.vmem [shape: f32[128,256], index: 2, kind: input, shape index: {}]
  %s3 = inlined_call_operand.vmem [shape: f32[128,128], index: 3, kind: input, shape index: {}]
  %s4 = inlined_call_operand.vmem [shape: f32[2,128], index: 4, kind: input, shape index: {}]
  %s5 = inlined_call_operand.vmem [shape: f32[514,1], index: 5, kind: input, shape index: {}]
  %s6 = inlined_call_operand.hbm [shape: f32[2,8], index: 6, kind: output, shape index: {}]
  %s7 = sld [smem:[#allocation0]]
  $region34: #{tpu_custom_call.1} parent=0
    _
  %s9 = ssub.s32 1, %s7
  %s10 = scalar_select 0, %s9, %s7
  $region1: #{tpu_custom_call.1} parent=0
    #allocation2 [shape = 'u8[1024]{0}', space=vmem, size = 0x400, scoped, tag = 'output window, operand 0, single buffered']
    #allocation3 [shape = 's32[1]{0}', space=sflag, size = 0x4, scoped, tag = 'scoped memory for tpu_custom_call.1']
    %11 = vsyncpa [#allocation3], 0
    // Predicated region
    $region2: #{tpu_custom_call.1} parent=1 // pred_check
      _
    $region3: #{tpu_custom_call.1} parent=1 // pred_check_branch
      %13 = sbr.rel (0) target = $region5
    $region4: #{tpu_custom_call.1} parent=1 // pred_region
      _
    $region5: #{tpu_custom_call.1} parent=1 // pred_fallthru
      _
    // Predicated region
    $region6: #{tpu_custom_call.1} parent=1 // pred_check
      _
    $region7: #{tpu_custom_call.1} parent=1 // pred_check_branch
      %15 = sbr.rel (0) target = $region9
    $region8: #{tpu_custom_call.1} parent=1 // pred_region
      _
    $region9: #{tpu_custom_call.1} parent=1 // pred_fallthru
      _
    // Predicated region
    $region10: #{tpu_custom_call.1} parent=1 // pred_check
      _
    $region11: #{tpu_custom_call.1} parent=1 // pred_check_branch
      %17 = sbr.rel (0) target = $region13
    $region12: #{tpu_custom_call.1} parent=1 // pred_region
      _
    $region13: #{tpu_custom_call.1} parent=1 // pred_fallthru
      _
    // Predicated region
    $region14: #{tpu_custom_call.1} parent=1 // pred_check
      _
    $region15: #{tpu_custom_call.1} parent=1 // pred_check_branch
      %19 = sbr.rel (0) target = $region17
    $region16: #{tpu_custom_call.1} parent=1 // pred_region
      _
    $region17: #{tpu_custom_call.1} parent=1 // pred_fallthru
      _
    // Predicated region
    $region18: #{tpu_custom_call.1} parent=1 // pred_check
      _
    $region19: #{tpu_custom_call.1} parent=1 // pred_check_branch
      %21 = sbr.rel (0) target = $region21
    $region20: #{tpu_custom_call.1} parent=1 // pred_region
      _
    $region21: #{tpu_custom_call.1} parent=1 // pred_fallthru
      _
    // Predicated region
    $region22: #{tpu_custom_call.1} parent=1 // pred_check
      _
    $region23: #{tpu_custom_call.1} parent=1 // pred_check_branch
      %23 = sbr.rel (0) target = $region25
    $region24: #{tpu_custom_call.1} parent=1 // pred_region
      _
    $region25: #{tpu_custom_call.1} parent=1 // pred_fallthru
      _
    %v24 = vld [vmem:[%s5] sm:$0xff]
    %v25 = vld [vmem:[%s5 + $0x8] sm:$0xff]
    %v26 = vld [vmem:[%s5 + $0x10] sm:$0xff]
    %v27 = vld [vmem:[%s5 + $0x18] sm:$0xff]
    %v28 = vld [vmem:[%s5 + $0x20] sm:$0xff]
    %v29 = vld [vmem:[%s5 + $0x28] sm:$0xff]
    %v30 = vld [vmem:[%s5 + $0x30] sm:$0xff]
    %v31 = vld [vmem:[%s5 + $0x38] sm:$0xff]
    %v32 = vld [vmem:[%s5 + $0x40] sm:$0xff]
    %v33 = vld [vmem:[%s5 + $0x48] sm:$0xff]
    %v34 = vld [vmem:[%s5 + $0x50] sm:$0xff]
    %v35 = vld [vmem:[%s5 + $0x58] sm:$0xff]
    %v36 = vld [vmem:[%s5 + $0x60] sm:$0xff]
    %v37 = vld [vmem:[%s5 + $0x68] sm:$0xff]
    %v38 = vld [vmem:[%s5 + $0x70] sm:$0xff]
    %v39 = vld [vmem:[%s5 + $0x78] sm:$0xff]
    %v40 = vld [vmem:[%s5 + $0x80] sm:$0xff]
    %v41 = vld [vmem:[%s5 + $0x88] sm:$0xff]
    %v42 = vld [vmem:[%s5 + $0x90] sm:$0xff]
    %v43 = vld [vmem:[%s5 + $0x98] sm:$0xff]
    %v44 = vld [vmem:[%s5 + $0xa0] sm:$0xff]
    %v45 = vld [vmem:[%s5 + $0xa8] sm:$0xff]
    %v46 = vld [vmem:[%s5 + $0xb0] sm:$0xff]
    %v47 = vld [vmem:[%s5 + $0xb8] sm:$0xff]
    %v48 = vld [vmem:[%s5 + $0xc0] sm:$0xff]
    %v49 = vld [vmem:[%s5 + $0xc8] sm:$0xff]
    %v50 = vld [vmem:[%s5 + $0xd0] sm:$0xff]
    %v51 = vld [vmem:[%s5 + $0xd8] sm:$0xff]
    %v52 = vld [vmem:[%s5 + $0xe0] sm:$0xff]
    %v53 = vld [vmem:[%s5 + $0xe8] sm:$0xff]
    %v54 = vld [vmem:[%s5 + $0xf0] sm:$0xff]
    %v55 = vld [vmem:[%s5 + $0xf8] sm:$0xff]
    %v56 = vld [vmem:[%s5 + $0x100] sm:$0xff]
    %v57 = vld [vmem:[%s5 + $0x108] sm:$0xff]
    %v58 = vld [vmem:[%s5 + $0x110] sm:$0xff]
    %v59 = vld [vmem:[%s5 + $0x118] sm:$0xff]
    %v60 = vld [vmem:[%s5 + $0x120] sm:$0xff]
    %v61 = vld [vmem:[%s5 + $0x128] sm:$0xff]
    %v62 = vld [vmem:[%s5 + $0x130] sm:$0xff]
    %v63 = vld [vmem:[%s5 + $0x138] sm:$0xff]
    %v64 = vld [vmem:[%s5 + $0x140] sm:$0xff]
    %v65 = vld [vmem:[%s5 + $0x148] sm:$0xff]
    %v66 = vld [vmem:[%s5 + $0x150] sm:$0xff]
    %v67 = vld [vmem:[%s5 + $0x158] sm:$0xff]
    %v68 = vld [vmem:[%s5 + $0x160] sm:$0xff]
    %v69 = vld [vmem:[%s5 + $0x168] sm:$0xff]
    %v70 = vld [vmem:[%s5 + $0x170] sm:$0xff]
    %v71 = vld [vmem:[%s5 + $0x178] sm:$0xff]
    %v72 = vld [vmem:[%s5 + $0x180] sm:$0xff]
    %v73 = vld [vmem:[%s5 + $0x188] sm:$0xff]
    %v74 = vld [vmem:[%s5 + $0x190] sm:$0xff]
    %v75 = vld [vmem:[%s5 + $0x198] sm:$0xff]
    %v76 = vld [vmem:[%s5 + $0x1a0] sm:$0xff]
    %v77 = vld [vmem:[%s5 + $0x1a8] sm:$0xff]
    %v78 = vld [vmem:[%s5 + $0x1b0] sm:$0xff]
    %v79 = vld [vmem:[%s5 + $0x1b8] sm:$0xff]
    %v80 = vld [vmem:[%s5 + $0x1c0] sm:$0xff]
    %v81 = vld [vmem:[%s5 + $0x1c8] sm:$0xff]
    %v82 = vld [vmem:[%s5 + $0x1d0] sm:$0xff]
    %v83 = vld [vmem:[%s5 + $0x1d8] sm:$0xff]
    %v84 = vld [vmem:[%s5 + $0x1e0] sm:$0xff]
    %v85 = vld [vmem:[%s5 + $0x1e8] sm:$0xff]
    %v86 = vld [vmem:[%s5 + $0x1f0] sm:$0xff]
    %v87 = vld [vmem:[%s5 + $0x1f8] sm:$0xff]
    %v88 = vld [vmem:[%s5 + $0x200] sm:$0x3]
    %v89 = vld [vmem:[%s1] sm:$0xff]
    %v90 = vld [vmem:[%s1 + $0x8] sm:$0xff]
    %v91 = vld [vmem:[%s1 + $0x10] sm:$0xff]
    %v92 = vld [vmem:[%s1 + $0x18] sm:$0xff]
    %v93 = vld [vmem:[%s1 + $0x20] sm:$0xff]
    %v94 = vld [vmem:[%s1 + $0x28] sm:$0xff]
    %v95 = vld [vmem:[%s1 + $0x30] sm:$0xff]
    %v96 = vld [vmem:[%s1 + $0x38] sm:$0xff]
    %v97 = vld [vmem:[%s1 + $0x40] sm:$0xff]
    %v98 = vld [vmem:[%s1 + $0x48] sm:$0xff]
    %v99 = vld [vmem:[%s1 + $0x50] sm:$0xff]
    %v100 = vld [vmem:[%s1 + $0x58] sm:$0xff]
    %v101 = vld [vmem:[%s1 + $0x60] sm:$0xff]
    %v102 = vld [vmem:[%s1 + $0x68] sm:$0xff]
    %v103 = vld [vmem:[%s1 + $0x70] sm:$0xff]
    %v104 = vld [vmem:[%s1 + $0x78] sm:$0xff]
    %v105 = vld [vmem:[%s1 + $0x80] sm:$0xff]
    %v106 = vld [vmem:[%s1 + $0x88] sm:$0xff]
    %v107 = vld [vmem:[%s1 + $0x90] sm:$0xff]
    %v108 = vld [vmem:[%s1 + $0x98] sm:$0xff]
    %v109 = vld [vmem:[%s1 + $0xa0] sm:$0xff]
    %v110 = vld [vmem:[%s1 + $0xa8] sm:$0xff]
    %v111 = vld [vmem:[%s1 + $0xb0] sm:$0xff]
    %v112 = vld [vmem:[%s1 + $0xb8] sm:$0xff]
    %v113 = vld [vmem:[%s1 + $0xc0] sm:$0xff]
    %v114 = vld [vmem:[%s1 + $0xc8] sm:$0xff]
    %v115 = vld [vmem:[%s1 + $0xd0] sm:$0xff]
    %v116 = vld [vmem:[%s1 + $0xd8] sm:$0xff]
    %v117 = vld [vmem:[%s1 + $0xe0] sm:$0xff]
    %v118 = vld [vmem:[%s1 + $0xe8] sm:$0xff]
    %v119 = vld [vmem:[%s1 + $0xf0] sm:$0xff]
    %v120 = vld [vmem:[%s1 + $0xf8] sm:$0xff]
    %v121 = vld [vmem:[%s0] sm:$0xff]
    %v122 = vld [vmem:[%s0 + $0x8] sm:$0xff]
    %v123 = vld [vmem:[%s0 + $0x10] sm:$0xff]
    %v124 = vld [vmem:[%s0 + $0x18] sm:$0xff]
    %126 = vset.pattern.permute.xlu0 0
    %127 = vperm.xlu0 %126, %v24
    %v128 = vpop.permute.xlu0 %127
    %131 = vset.pattern.permute.xlu0 0
    %132 = vperm.xlu0 %131, %v25
    %v133 = vpop.permute.xlu0 %132
    %136 = vset.pattern.permute.xlu0 0
    %137 = vperm.xlu0 %136, %v26
    %v138 = vpop.permute.xlu0 %137
    %141 = vset.pattern.permute.xlu0 0
    %142 = vperm.xlu0 %141, %v27
    %v143 = vpop.permute.xlu0 %142
    %146 = vset.pattern.permute.xlu0 0
    %147 = vperm.xlu0 %146, %v28
    %v148 = vpop.permute.xlu0 %147
    %151 = vset.pattern.permute.xlu0 0
    %152 = vperm.xlu0 %151, %v29
    %v153 = vpop.permute.xlu0 %152
    %156 = vset.pattern.permute.xlu0 0
    %157 = vperm.xlu0 %156, %v30
    %v158 = vpop.permute.xlu0 %157
    %161 = vset.pattern.permute.xlu0 0
    %162 = vperm.xlu0 %161, %v31
    %v163 = vpop.permute.xlu0 %162
    %166 = vset.pattern.permute.xlu0 0
    %167 = vperm.xlu0 %166, %v32
    %v168 = vpop.permute.xlu0 %167
    %171 = vset.pattern.permute.xlu0 0
    %172 = vperm.xlu0 %171, %v33
    %v173 = vpop.permute.xlu0 %172
    %176 = vset.pattern.permute.xlu0 0
    %177 = vperm.xlu0 %176, %v34
    %v178 = vpop.permute.xlu0 %177
    %181 = vset.pattern.permute.xlu0 0
    %182 = vperm.xlu0 %181, %v35
    %v183 = vpop.permute.xlu0 %182
    %186 = vset.pattern.permute.xlu0 0
    %187 = vperm.xlu0 %186, %v36
    %v188 = vpop.permute.xlu0 %187
    %191 = vset.pattern.permute.xlu0 0
    %192 = vperm.xlu0 %191, %v37
    %v193 = vpop.permute.xlu0 %192
    %196 = vset.pattern.permute.xlu0 0
    %197 = vperm.xlu0 %196, %v38
    %v198 = vpop.permute.xlu0 %197
    %201 = vset.pattern.permute.xlu0 0
    %202 = vperm.xlu0 %201, %v39
    %v203 = vpop.permute.xlu0 %202
    %206 = vset.pattern.permute.xlu0 0
    %207 = vperm.xlu0 %206, %v40
    %v208 = vpop.permute.xlu0 %207
    %211 = vset.pattern.permute.xlu0 0
    %212 = vperm.xlu0 %211, %v41
    %v213 = vpop.permute.xlu0 %212
    %216 = vset.pattern.permute.xlu0 0
    %217 = vperm.xlu0 %216, %v42
    %v218 = vpop.permute.xlu0 %217
    %221 = vset.pattern.permute.xlu0 0
    %222 = vperm.xlu0 %221, %v43
    %v223 = vpop.permute.xlu0 %222
    %226 = vset.pattern.permute.xlu0 0
    %227 = vperm.xlu0 %226, %v44
    %v228 = vpop.permute.xlu0 %227
    %231 = vset.pattern.permute.xlu0 0
    %232 = vperm.xlu0 %231, %v45
    %v233 = vpop.permute.xlu0 %232
    %236 = vset.pattern.permute.xlu0 0
    %237 = vperm.xlu0 %236, %v46
    %v238 = vpop.permute.xlu0 %237
    %241 = vset.pattern.permute.xlu0 0
    %242 = vperm.xlu0 %241, %v47
    %v243 = vpop.permute.xlu0 %242
    %246 = vset.pattern.permute.xlu0 0
    %247 = vperm.xlu0 %246, %v48
    %v248 = vpop.permute.xlu0 %247
    %251 = vset.pattern.permute.xlu0 0
    %252 = vperm.xlu0 %251, %v49
    %v253 = vpop.permute.xlu0 %252
    %256 = vset.pattern.permute.xlu0 0
    %257 = vperm.xlu0 %256, %v50
    %v258 = vpop.permute.xlu0 %257
    %261 = vset.pattern.permute.xlu0 0
    %262 = vperm.xlu0 %261, %v51
    %v263 = vpop.permute.xlu0 %262
    %266 = vset.pattern.permute.xlu0 0
    %267 = vperm.xlu0 %266, %v52
    %v268 = vpop.permute.xlu0 %267
    %271 = vset.pattern.permute.xlu0 0
    %272 = vperm.xlu0 %271, %v53
    %v273 = vpop.permute.xlu0 %272
    %276 = vset.pattern.permute.xlu0 0
    %277 = vperm.xlu0 %276, %v54
    %v278 = vpop.permute.xlu0 %277
    %281 = vset.pattern.permute.xlu0 0
    %282 = vperm.xlu0 %281, %v55
    %v283 = vpop.permute.xlu0 %282
    %vm285 = vcmask 261120
    %v287 = vsel %vm285, %v89, 0
    %v290 = vsel %vm285, %v90, 0
    %v293 = vsel %vm285, %v91, 0
    %v296 = vsel %vm285, %v92, 0
    %v299 = vsel %vm285, %v93, 0
    %v302 = vsel %vm285, %v94, 0
    %v305 = vsel %vm285, %v95, 0
    %v308 = vsel %vm285, %v96, 0
    %v311 = vsel %vm285, %v97, 0
    %v314 = vsel %vm285, %v98, 0
    %v317 = vsel %vm285, %v99, 0
    %v320 = vsel %vm285, %v100, 0
    %v323 = vsel %vm285, %v101, 0
    %v326 = vsel %vm285, %v102, 0
    %v329 = vsel %vm285, %v103, 0
    %v332 = vsel %vm285, %v104, 0
    %v335 = vsel %vm285, %v105, 0
    %v338 = vsel %vm285, %v106, 0
    %v341 = vsel %vm285, %v107, 0
    %v344 = vsel %vm285, %v108, 0
    %v347 = vsel %vm285, %v109, 0
    %v350 = vsel %vm285, %v110, 0
    %v353 = vsel %vm285, %v111, 0
    %v356 = vsel %vm285, %v112, 0
    %v359 = vsel %vm285, %v113, 0
    %v362 = vsel %vm285, %v114, 0
    %v365 = vsel %vm285, %v115, 0
    %v368 = vsel %vm285, %v116, 0
    %v371 = vsel %vm285, %v117, 0
    %v374 = vsel %vm285, %v118, 0
    %v377 = vsel %vm285, %v119, 0
    %v380 = vsel %vm285, %v120, 0
    %382 = vmatprep.subr.mxu0 0.0
    %383 = vmatpush1.msra.mxu0 %v121
    %384 = vmatprep.subr.mxu0 0.0
    %385 = vmatpush1.msra.mxu0 %v122
    %386 = vmatprep.subr.mxu0 0.0
    %387 = vmatpush1.msra.mxu0 %v123
    %388 = vmatprep.subr.mxu0 0.0
    %389 = vmatpush1.msra.mxu0 %v124
    %390 = vmatprep.subr.mxu0 0.0
    %391 = vmatpush1.msra.mxu0 0.0
    %392 = vmatprep.subr.mxu0 0.0
    %393 = vmatpush1.msra.mxu0 0.0
    %394 = vmatprep.subr.mxu0 0.0
    %395 = vmatpush1.msra.mxu0 0.0
    %396 = vmatprep.subr.mxu0 0.0
    %397 = vmatpush1.msra.mxu0 0.0
    %398 = vmatprep.subr.mxu0 0.0
    %399 = vmatpush1.msra.mxu0 0.0
    %400 = vmatprep.subr.mxu0 0.0
    %401 = vmatpush1.msra.mxu0 0.0
    %402 = vmatprep.subr.mxu0 0.0
    %403 = vmatpush1.msra.mxu0 0.0
    %404 = vmatprep.subr.mxu0 0.0
    %405 = vmatpush1.msra.mxu0 0.0
    %406 = vmatprep.subr.mxu0 0.0
    %407 = vmatpush1.msra.mxu0 0.0
    %408 = vmatprep.subr.mxu0 0.0
    %409 = vmatpush1.msra.mxu0 0.0
    %410 = vmatprep.subr.mxu0 0.0
    %411 = vmatpush1.msra.mxu0 0.0
    %412 = vmatprep.subr.mxu0 0.0
    %413 = vmatpush1.msra.mxu0 0.0
    %414 = vmatprep.subr.mxu0 0.0
    %415 = vmatpush1.msra.mxu0 0.0
    %416 = vmatprep.subr.mxu0 0.0
    %417 = vmatpush1.msra.mxu0 0.0
    %418 = vmatprep.subr.mxu0 0.0
    %419 = vmatpush1.msra.mxu0 0.0
    %420 = vmatprep.subr.mxu0 0.0
    %421 = vmatpush1.msra.mxu0 0.0
    %422 = vmatprep.subr.mxu0 0.0
    %423 = vmatpush1.msra.mxu0 0.0
    %424 = vmatprep.subr.mxu0 0.0
    %425 = vmatpush1.msra.mxu0 0.0
    %426 = vmatprep.subr.mxu0 0.0
    %427 = vmatpush1.msra.mxu0 0.0
    %428 = vmatprep.subr.mxu0 0.0
    %429 = vmatpush1.msra.mxu0 0.0
    %430 = vmatprep.subr.mxu0 0.0
    %431 = vmatpush1.msra.mxu0 0.0
    %432 = vmatprep.subr.mxu0 0.0
    %433 = vmatpush1.msra.mxu0 0.0
    %434 = vmatprep.subr.mxu0 0.0
    %435 = vmatpush1.msra.mxu0 0.0
    %436 = vmatprep.subr.mxu0 0.0
    %437 = vmatpush1.msra.mxu0 0.0
    %438 = vmatprep.subr.mxu0 0.0
    %439 = vmatpush1.msra.mxu0 0.0
    %440 = vmatprep.subr.mxu0 0.0
    %441 = vmatpush1.msra.mxu0 0.0
    %442 = vmatprep.subr.mxu0 0.0
    %443 = vmatpush1.msra.mxu0 0.0
    %444 = vmatprep.subr.mxu0 0.0
    %445 = vmatpush1.msra.mxu0 0.0
    %446 = vmatprep.mubr.f32.mxu0 0.0
    %447 = vmatmul.mubr.f32.gmra.mrb[0].mxu0 %v287
    %v448 = vpop.f32.mrb[0].mxu0
    %v449 = vadd.f32 %v128, %v448
    %v450 = vpop.f32.mrb[0].mxu0
    %451 = vmatprep.mubr.f32.mxu0 0.0
    %452 = vmatmul.mubr.f32.gmra.mrb[0].mxu0 %v290
    %v453 = vpop.f32.mrb[0].mxu0
    %v454 = vadd.f32 %v133, %v453
    %v455 = vpop.f32.mrb[0].mxu0
    %456 = vmatprep.mubr.f32.mxu0 0.0
    %457 = vmatmul.mubr.f32.gmra.mrb[0].mxu0 %v293
    %v458 = vpop.f32.mrb[0].mxu0
    %v459 = vadd.f32 %v138, %v458
    %v460 = vpop.f32.mrb[0].mxu0
    %461 = vmatprep.mubr.f32.mxu0 0.0
    %462 = vmatmul.mubr.f32.gmra.mrb[0].mxu0 %v296
    %v463 = vpop.f32.mrb[0].mxu0
    %v464 = vadd.f32 %v143, %v463
    %v465 = vpop.f32.mrb[0].mxu0
    %466 = vmatprep.mubr.f32.mxu0 0.0
    %467 = vmatmul.mubr.f32.gmra.mrb[0].mxu0 %v299
    %v468 = vpop.f32.mrb[0].mxu0
    %v469 = vadd.f32 %v148, %v468
    %v470 = vpop.f32.mrb[0].mxu0
    %471 = vmatprep.mubr.f32.mxu0 0.0
    %472 = vmatmul.mubr.f32.gmra.mrb[0].mxu0 %v302
    %v473 = vpop.f32.mrb[0].mxu0
    %v474 = vadd.f32 %v153, %v473
    %v475 = vpop.f32.mrb[0].mxu0
    %476 = vmatprep.mubr.f32.mxu0 0.0
    %477 = vmatmul.mubr.f32.gmra.mrb[0].mxu0 %v305
    %v478 = vpop.f32.mrb[0].mxu0
    %v479 = vadd.f32 %v158, %v478
    %v480 = vpop.f32.mrb[0].mxu0
    %481 = vmatprep.mubr.f32.mxu0 0.0
    %482 = vmatmul.mubr.f32.gmra.mrb[0].mxu0 %v308
    %v483 = vpop.f32.mrb[0].mxu0
    %v484 = vadd.f32 %v163, %v483
    %v485 = vpop.f32.mrb[0].mxu0
    %486 = vmatprep.mubr.f32.mxu0 0.0
    %487 = vmatmul.mubr.f32.gmra.mrb[0].mxu0 %v311
    %v488 = vpop.f32.mrb[0].mxu0
    %v489 = vadd.f32 %v168, %v488
    %v490 = vpop.f32.mrb[0].mxu0
    %491 = vmatprep.mubr.f32.mxu0 0.0
    %492 = vmatmul.mubr.f32.gmra.mrb[0].mxu0 %v314
    %v493 = vpop.f32.mrb[0].mxu0
    %v494 = vadd.f32 %v173, %v493
    %v495 = vpop.f32.mrb[0].mxu0
    %496 = vmatprep.mubr.f32.mxu0 0.0
    %497 = vmatmul.mubr.f32.gmra.mrb[0].mxu0 %v317
    %v498 = vpop.f32.mrb[0].mxu0
    %v499 = vadd.f32 %v178, %v498
    %v500 = vpop.f32.mrb[0].mxu0
    %501 = vmatprep.mubr.f32.mxu0 0.0
    %502 = vmatmul.mubr.f32.gmra.mrb[0].mxu0 %v320
    %v503 = vpop.f32.mrb[0].mxu0
    %v504 = vadd.f32 %v183, %v503
    %v505 = vpop.f32.mrb[0].mxu0
    %506 = vmatprep.mubr.f32.mxu0 0.0
    %507 = vmatmul.mubr.f32.gmra.mrb[0].mxu0 %v323
    %v508 = vpop.f32.mrb[0].mxu0
    %v509 = vadd.f32 %v188, %v508
    %v510 = vpop.f32.mrb[0].mxu0
    %511 = vmatprep.mubr.f32.mxu0 0.0
    %512 = vmatmul.mubr.f32.gmra.mrb[0].mxu0 %v326
    %v513 = vpop.f32.mrb[0].mxu0
    %v514 = vadd.f32 %v193, %v513
    %v515 = vpop.f32.mrb[0].mxu0
    %516 = vmatprep.mubr.f32.mxu0 0.0
    %517 = vmatmul.mubr.f32.gmra.mrb[0].mxu0 %v329
    %v518 = vpop.f32.mrb[0].mxu0
    %v519 = vadd.f32 %v198, %v518
    %v520 = vpop.f32.mrb[0].mxu0
    %521 = vmatprep.mubr.f32.mxu0 0.0
    %522 = vmatmul.mubr.f32.gmra.mrb[0].mxu0 %v332
    %v523 = vpop.f32.mrb[0].mxu0
    %v524 = vadd.f32 %v203, %v523
    %v525 = vpop.f32.mrb[0].mxu0
    %526 = vmatprep.mubr.f32.mxu0 0.0
    %527 = vmatmul.mubr.f32.gmra.mrb[0].mxu0 %v335
    %v528 = vpop.f32.mrb[0].mxu0
    %v529 = vadd.f32 %v208, %v528
    %v530 = vpop.f32.mrb[0].mxu0
    %531 = vmatprep.mubr.f32.mxu0 0.0
    %532 = vmatmul.mubr.f32.gmra.mrb[0].mxu0 %v338
    %v533 = vpop.f32.mrb[0].mxu0
    %v534 = vadd.f32 %v213, %v533
    %v535 = vpop.f32.mrb[0].mxu0
    %536 = vmatprep.mubr.f32.mxu0 0.0
    %537 = vmatmul.mubr.f32.gmra.mrb[0].mxu0 %v341
    %v538 = vpop.f32.mrb[0].mxu0
    %v539 = vadd.f32 %v218, %v538
    %v540 = vpop.f32.mrb[0].mxu0
    %541 = vmatprep.mubr.f32.mxu0 0.0
    %542 = vmatmul.mubr.f32.gmra.mrb[0].mxu0 %v344
    %v543 = vpop.f32.mrb[0].mxu0
    %v544 = vadd.f32 %v223, %v543
    %v545 = vpop.f32.mrb[0].mxu0
    %546 = vmatprep.mubr.f32.mxu0 0.0
    %547 = vmatmul.mubr.f32.gmra.mrb[0].mxu0 %v347
    %v548 = vpop.f32.mrb[0].mxu0
    %v549 = vadd.f32 %v228, %v548
    %v550 = vpop.f32.mrb[0].mxu0
    %551 = vmatprep.mubr.f32.mxu0 0.0
    %552 = vmatmul.mubr.f32.gmra.mrb[0].mxu0 %v350
    %v553 = vpop.f32.mrb[0].mxu0
    %v554 = vadd.f32 %v233, %v553
    %v555 = vpop.f32.mrb[0].mxu0
    %556 = vmatprep.mubr.f32.mxu0 0.0
    %557 = vmatmul.mubr.f32.gmra.mrb[0].mxu0 %v353
    %v558 = vpop.f32.mrb[0].mxu0
    %v559 = vadd.f32 %v238, %v558
    %v560 = vpop.f32.mrb[0].mxu0
    %561 = vmatprep.mubr.f32.mxu0 0.0
    %562 = vmatmul.mubr.f32.gmra.mrb[0].mxu0 %v356
    %v563 = vpop.f32.mrb[0].mxu0
    %v564 = vadd.f32 %v243, %v563
    %v565 = vpop.f32.mrb[0].mxu0
    %566 = vmatprep.mubr.f32.mxu0 0.0
    %567 = vmatmul.mubr.f32.gmra.mrb[0].mxu0 %v359
    %v568 = vpop.f32.mrb[0].mxu0
    %v569 = vadd.f32 %v248, %v568
    %v570 = vpop.f32.mrb[0].mxu0
    %571 = vmatprep.mubr.f32.mxu0 0.0
    %572 = vmatmul.mubr.f32.gmra.mrb[0].mxu0 %v362
    %v573 = vpop.f32.mrb[0].mxu0
    %v574 = vadd.f32 %v253, %v573
    %v575 = vpop.f32.mrb[0].mxu0
    %576 = vmatprep.mubr.f32.mxu0 0.0
    %577 = vmatmul.mubr.f32.gmra.mrb[0].mxu0 %v365
    %v578 = vpop.f32.mrb[0].mxu0
    %v579 = vadd.f32 %v258, %v578
    %v580 = vpop.f32.mrb[0].mxu0
    %581 = vmatprep.mubr.f32.mxu0 0.0
    %582 = vmatmul.mubr.f32.gmra.mrb[0].mxu0 %v368
    %v583 = vpop.f32.mrb[0].mxu0
    %v584 = vadd.f32 %v263, %v583
    %v585 = vpop.f32.mrb[0].mxu0
    %586 = vmatprep.mubr.f32.mxu0 0.0
    %587 = vmatmul.mubr.f32.gmra.mrb[0].mxu0 %v371
    %v588 = vpop.f32.mrb[0].mxu0
    %v589 = vadd.f32 %v268, %v588
    %v590 = vpop.f32.mrb[0].mxu0
    %591 = vmatprep.mubr.f32.mxu0 0.0
    %592 = vmatmul.mubr.f32.gmra.mrb[0].mxu0 %v374
    %v593 = vpop.f32.mrb[0].mxu0
    %v594 = vadd.f32 %v273, %v593
    %v595 = vpop.f32.mrb[0].mxu0
    %596 = vmatprep.mubr.f32.mxu0 0.0
    %597 = vmatmul.mubr.f32.gmra.mrb[0].mxu0 %v377
    %v598 = vpop.f32.mrb[0].mxu0
    %v599 = vadd.f32 %v278, %v598
    %v600 = vpop.f32.mrb[0].mxu0
    %601 = vmatprep.mubr.f32.mxu0 0.0
    %602 = vmatmul.mubr.f32.gmra.mrb[0].mxu0 %v380
    %v603 = vpop.f32.mrb[0].mxu0
    %v604 = vadd.f32 %v283, %v603
    %v605 = vpop.f32.mrb[0].mxu0
    %606 = vdwg.mxu0
    %v607 = vmax.f32 %v449, 0.0
    %v608 = vmax.f32 %v454, 0.0
    %v609 = vmax.f32 %v459, 0.0
    %v610 = vmax.f32 %v464, 0.0
    %v611 = vmax.f32 %v469, 0.0
    %v612 = vmax.f32 %v474, 0.0
    %v613 = vmax.f32 %v479, 0.0
    %v614 = vmax.f32 %v484, 0.0
    %v615 = vmax.f32 %v489, 0.0
    %v616 = vmax.f32 %v494, 0.0
    %v617 = vmax.f32 %v499, 0.0
    %v618 = vmax.f32 %v504, 0.0
    %v619 = vmax.f32 %v509, 0.0
    %v620 = vmax.f32 %v514, 0.0
    %v621 = vmax.f32 %v519, 0.0
    %v622 = vmax.f32 %v524, 0.0
    %v623 = vmax.f32 %v529, 0.0
    %v624 = vmax.f32 %v534, 0.0
    %v625 = vmax.f32 %v539, 0.0
    %v626 = vmax.f32 %v544, 0.0
    %v627 = vmax.f32 %v549, 0.0
    %v628 = vmax.f32 %v554, 0.0
    %v629 = vmax.f32 %v559, 0.0
    %v630 = vmax.f32 %v564, 0.0
    %v631 = vmax.f32 %v569, 0.0
    %v632 = vmax.f32 %v574, 0.0
    %v633 = vmax.f32 %v579, 0.0
    %v634 = vmax.f32 %v584, 0.0
    %v635 = vmax.f32 %v589, 0.0
    %v636 = vmax.f32 %v594, 0.0
    %v637 = vmax.f32 %v599, 0.0
    %v638 = vmax.f32 %v604, 0.0
    %v639 = vld [vmem:[%s2] sm:$0xff]
    %v640 = vld [vmem:[%s2 + $0x8] sm:$0xff]
    %v641 = vld [vmem:[%s2 + $0x10] sm:$0xff]
    %v642 = vld [vmem:[%s2 + $0x18] sm:$0xff]
    %v643 = vld [vmem:[%s2 + $0x20] sm:$0xff]
    %v644 = vld [vmem:[%s2 + $0x28] sm:$0xff]
    %v645 = vld [vmem:[%s2 + $0x30] sm:$0xff]
    %v646 = vld [vmem:[%s2 + $0x38] sm:$0xff]
    %v647 = vld [vmem:[%s2 + $0x40] sm:$0xff]
    %v648 = vld [vmem:[%s2 + $0x48] sm:$0xff]
    %v649 = vld [vmem:[%s2 + $0x50] sm:$0xff]
    %v650 = vld [vmem:[%s2 + $0x58] sm:$0xff]
    %v651 = vld [vmem:[%s2 + $0x60] sm:$0xff]
    %v652 = vld [vmem:[%s2 + $0x68] sm:$0xff]
    %v653 = vld [vmem:[%s2 + $0x70] sm:$0xff]
    %v654 = vld [vmem:[%s2 + $0x78] sm:$0xff]
    %v655 = vld [vmem:[%s2 + $0x80] sm:$0xff]
    %v656 = vld [vmem:[%s2 + $0x88] sm:$0xff]
    %v657 = vld [vmem:[%s2 + $0x90] sm:$0xff]
    %v658 = vld [vmem:[%s2 + $0x98] sm:$0xff]
    %v659 = vld [vmem:[%s2 + $0xa0] sm:$0xff]
    %v660 = vld [vmem:[%s2 + $0xa8] sm:$0xff]
    %v661 = vld [vmem:[%s2 + $0xb0] sm:$0xff]
    %v662 = vld [vmem:[%s2 + $0xb8] sm:$0xff]
    %v663 = vld [vmem:[%s2 + $0xc0] sm:$0xff]
    %v664 = vld [vmem:[%s2 + $0xc8] sm:$0xff]
    %v665 = vld [vmem:[%s2 + $0xd0] sm:$0xff]
    %v666 = vld [vmem:[%s2 + $0xd8] sm:$0xff]
    %v667 = vld [vmem:[%s2 + $0xe0] sm:$0xff]
    %v668 = vld [vmem:[%s2 + $0xe8] sm:$0xff]
    %v669 = vld [vmem:[%s2 + $0xf0] sm:$0xff]
    %v670 = vld [vmem:[%s2 + $0xf8] sm:$0xff]
    %672 = vset.pattern.permute.xlu0 0
    %673 = vperm.xlu0 %672, %v56
    %v674 = vpop.permute.xlu0 %673
    %677 = vset.pattern.permute.xlu0 0
    %678 = vperm.xlu0 %677, %v57
    %v679 = vpop.permute.xlu0 %678
    %682 = vset.pattern.permute.xlu0 0
    %683 = vperm.xlu0 %682, %v58
    %v684 = vpop.permute.xlu0 %683
    %687 = vset.pattern.permute.xlu0 0
    %688 = vperm.xlu0 %687, %v59
    %v689 = vpop.permute.xlu0 %688
    %692 = vset.pattern.permute.xlu0 0
    %693 = vperm.xlu0 %692, %v60
    %v694 = vpop.permute.xlu0 %693
    %697 = vset.pattern.permute.xlu0 0
    %698 = vperm.xlu0 %697, %v61
    %v699 = vpop.permute.xlu0 %698
    %702 = vset.pattern.permute.xlu0 0
    %703 = vperm.xlu0 %702, %v62
    %v704 = vpop.permute.xlu0 %703
    %707 = vset.pattern.permute.xlu0 0
    %708 = vperm.xlu0 %707, %v63
    %v709 = vpop.permute.xlu0 %708
    %712 = vset.pattern.permute.xlu0 0
    %713 = vperm.xlu0 %712, %v64
    %v714 = vpop.permute.xlu0 %713
    %717 = vset.pattern.permute.xlu0 0
    %718 = vperm.xlu0 %717, %v65
    %v719 = vpop.permute.xlu0 %718
    %722 = vset.pattern.permute.xlu0 0
    %723 = vperm.xlu0 %722, %v66
    %v724 = vpop.permute.xlu0 %723
    %727 = vset.pattern.permute.xlu0 0
    %728 = vperm.xlu0 %727, %v67
    %v729 = vpop.permute.xlu0 %728
    %732 = vset.pattern.permute.xlu0 0
    %733 = vperm.xlu0 %732, %v68
    %v734 = vpop.permute.xlu0 %733
    %737 = vset.pattern.permute.xlu0 0
    %738 = vperm.xlu0 %737, %v69
    %v739 = vpop.permute.xlu0 %738
    %742 = vset.pattern.permute.xlu0 0
    %743 = vperm.xlu0 %742, %v70
    %v744 = vpop.permute.xlu0 %743
    %747 = vset.pattern.permute.xlu0 0
    %748 = vperm.xlu0 %747, %v71
    %v749 = vpop.permute.xlu0 %748
    %751 = vmatprep.subr.mxu0 0.0
    %752 = vmatpush1.msra.mxu0 %v607
    %753 = vmatprep.subr.mxu0 0.0
    %754 = vmatpush1.msra.mxu0 %v608
    %755 = vmatprep.subr.mxu0 0.0
    %756 = vmatpush1.msra.mxu0 %v609
    %757 = vmatprep.subr.mxu0 0.0
    %758 = vmatpush1.msra.mxu0 %v610
    %759 = vmatprep.subr.mxu0 0.0
    %760 = vmatpush1.msra.mxu0 %v611
    %761 = vmatprep.subr.mxu0 0.0
    %762 = vmatpush1.msra.mxu0 %v612
    %763 = vmatprep.subr.mxu0 0.0
    %764 = vmatpush1.msra.mxu0 %v613
    %765 = vmatprep.subr.mxu0 0.0
    %766 = vmatpush1.msra.mxu0 %v614
    %767 = vmatprep.subr.mxu0 0.0
    %768 = vmatpush1.msra.mxu0 %v615
    %769 = vmatprep.subr.mxu0 0.0
    %770 = vmatpush1.msra.mxu0 %v616
    %771 = vmatprep.subr.mxu0 0.0
    %772 = vmatpush1.msra.mxu0 %v617
    %773 = vmatprep.subr.mxu0 0.0
    %774 = vmatpush1.msra.mxu0 %v618
    %775 = vmatprep.subr.mxu0 0.0
    %776 = vmatpush1.msra.mxu0 %v619
    %777 = vmatprep.subr.mxu0 0.0
    %778 = vmatpush1.msra.mxu0 %v620
    %779 = vmatprep.subr.mxu0 0.0
    %780 = vmatpush1.msra.mxu0 %v621
    %781 = vmatprep.subr.mxu0 0.0
    %782 = vmatpush1.msra.mxu0 %v622
    %783 = vmatprep.subr.mxu0 0.0
    %784 = vmatpush1.msra.mxu0 %v623
    %785 = vmatprep.subr.mxu0 0.0
    %786 = vmatpush1.msra.mxu0 %v624
    %787 = vmatprep.subr.mxu0 0.0
    %788 = vmatpush1.msra.mxu0 %v625
    %789 = vmatprep.subr.mxu0 0.0
    %790 = vmatpush1.msra.mxu0 %v626
    %791 = vmatprep.subr.mxu0 0.0
    %792 = vmatpush1.msra.mxu0 %v627
    %793 = vmatprep.subr.mxu0 0.0
    %794 = vmatpush1.msra.mxu0 %v628
    %795 = vmatprep.subr.mxu0 0.0
    %796 = vmatpush1.msra.mxu0 %v629
    %797 = vmatprep.subr.mxu0 0.0
    %798 = vmatpush1.msra.mxu0 %v630
    %799 = vmatprep.subr.mxu0 0.0
    %800 = vmatpush1.msra.mxu0 %v631
    %801 = vmatprep.subr.mxu0 0.0
    %802 = vmatpush1.msra.mxu0 %v632
    %803 = vmatprep.subr.mxu0 0.0
    %804 = vmatpush1.msra.mxu0 %v633
    %805 = vmatprep.subr.mxu0 0.0
    %806 = vmatpush1.msra.mxu0 %v634
    %807 = vmatprep.subr.mxu0 0.0
    %808 = vmatpush1.msra.mxu0 %v635
    %809 = vmatprep.subr.mxu0 0.0
    %810 = vmatpush1.msra.mxu0 %v636
    %811 = vmatprep.subr.mxu0 0.0
    %812 = vmatpush1.msra.mxu0 %v637
    %813 = vmatprep.subr.mxu0 0.0
    %814 = vmatpush1.msra.mxu0 %v638
    %815 = vmatprep.mubr.f32.mxu0 %v640
    %816 = vmatmul.mubr.f32.gmra.mrb[0].mxu0 %v639
    %v817 = vpop.f32.mrb[0].mxu0
    %v818 = vadd.f32 %v674, %v817
    %v819 = vpop.f32.mrb[0].mxu0
    %820 = vmatprep.mubr.f32.mxu0 %v642
    %821 = vmatmul.mubr.f32.gmra.mrb[0].mxu0 %v641
    %v822 = vpop.f32.mrb[0].mxu0
    %v823 = vadd.f32 %v679, %v822
    %v824 = vpop.f32.mrb[0].mxu0
    %825 = vmatprep.mubr.f32.mxu0 %v644
    %826 = vmatmul.mubr.f32.gmra.mrb[0].mxu0 %v643
    %v827 = vpop.f32.mrb[0].mxu0
    %v828 = vadd.f32 %v684, %v827
    %v829 = vpop.f32.mrb[0].mxu0
    %830 = vmatprep.mubr.f32.mxu0 %v646
    %831 = vmatmul.mubr.f32.gmra.mrb[0].mxu0 %v645
    %v832 = vpop.f32.mrb[0].mxu0
    %v833 = vadd.f32 %v689, %v832
    %v834 = vpop.f32.mrb[0].mxu0
    %835 = vmatprep.mubr.f32.mxu0 %v648
    %836 = vmatmul.mubr.f32.gmra.mrb[0].mxu0 %v647
    %v837 = vpop.f32.mrb[0].mxu0
    %v838 = vadd.f32 %v694, %v837
    %v839 = vpop.f32.mrb[0].mxu0
    %840 = vmatprep.mubr.f32.mxu0 %v650
    %841 = vmatmul.mubr.f32.gmra.mrb[0].mxu0 %v649
    %v842 = vpop.f32.mrb[0].mxu0
    %v843 = vadd.f32 %v699, %v842
    %v844 = vpop.f32.mrb[0].mxu0
    %845 = vmatprep.mubr.f32.mxu0 %v652
    %846 = vmatmul.mubr.f32.gmra.mrb[0].mxu0 %v651
    %v847 = vpop.f32.mrb[0].mxu0
    %v848 = vadd.f32 %v704, %v847
    %v849 = vpop.f32.mrb[0].mxu0
    %850 = vmatprep.mubr.f32.mxu0 %v654
    %851 = vmatmul.mubr.f32.gmra.mrb[0].mxu0 %v653
    %v852 = vpop.f32.mrb[0].mxu0
    %v853 = vadd.f32 %v709, %v852
    %v854 = vpop.f32.mrb[0].mxu0
    %855 = vmatprep.mubr.f32.mxu0 %v656
    %856 = vmatmul.mubr.f32.gmra.mrb[0].mxu0 %v655
    %v857 = vpop.f32.mrb[0].mxu0
    %v858 = vadd.f32 %v714, %v857
    %v859 = vpop.f32.mrb[0].mxu0
    %860 = vmatprep.mubr.f32.mxu0 %v658
    %861 = vmatmul.mubr.f32.gmra.mrb[0].mxu0 %v657
    %v862 = vpop.f32.mrb[0].mxu0
    %v863 = vadd.f32 %v719, %v862
    %v864 = vpop.f32.mrb[0].mxu0
    %865 = vmatprep.mubr.f32.mxu0 %v660
    %866 = vmatmul.mubr.f32.gmra.mrb[0].mxu0 %v659
    %v867 = vpop.f32.mrb[0].mxu0
    %v868 = vadd.f32 %v724, %v867
    %v869 = vpop.f32.mrb[0].mxu0
    %870 = vmatprep.mubr.f32.mxu0 %v662
    %871 = vmatmul.mubr.f32.gmra.mrb[0].mxu0 %v661
    %v872 = vpop.f32.mrb[0].mxu0
    %v873 = vadd.f32 %v729, %v872
    %v874 = vpop.f32.mrb[0].mxu0
    %875 = vmatprep.mubr.f32.mxu0 %v664
    %876 = vmatmul.mubr.f32.gmra.mrb[0].mxu0 %v663
    %v877 = vpop.f32.mrb[0].mxu0
    %v878 = vadd.f32 %v734, %v877
    %v879 = vpop.f32.mrb[0].mxu0
    %880 = vmatprep.mubr.f32.mxu0 %v666
    %881 = vmatmul.mubr.f32.gmra.mrb[0].mxu0 %v665
    %v882 = vpop.f32.mrb[0].mxu0
    %v883 = vadd.f32 %v739, %v882
    %v884 = vpop.f32.mrb[0].mxu0
    %885 = vmatprep.mubr.f32.mxu0 %v668
    %886 = vmatmul.mubr.f32.gmra.mrb[0].mxu0 %v667
    %v887 = vpop.f32.mrb[0].mxu0
    %v888 = vadd.f32 %v744, %v887
    %v889 = vpop.f32.mrb[0].mxu0
    %890 = vmatprep.mubr.f32.mxu0 %v670
    %891 = vmatmul.mubr.f32.gmra.mrb[0].mxu0 %v669
    %v892 = vpop.f32.mrb[0].mxu0
    %v893 = vadd.f32 %v749, %v892
    %v894 = vpop.f32.mrb[0].mxu0
    %895 = vdwg.mxu0
    %v896 = vmax.f32 %v818, 0.0
    %v897 = vmax.f32 %v823, 0.0
    %v898 = vmax.f32 %v828, 0.0
    %v899 = vmax.f32 %v833, 0.0
    %v900 = vmax.f32 %v838, 0.0
    %v901 = vmax.f32 %v843, 0.0
    %v902 = vmax.f32 %v848, 0.0
    %v903 = vmax.f32 %v853, 0.0
    %v904 = vmax.f32 %v858, 0.0
    %v905 = vmax.f32 %v863, 0.0
    %v906 = vmax.f32 %v868, 0.0
    %v907 = vmax.f32 %v873, 0.0
    %v908 = vmax.f32 %v878, 0.0
    %v909 = vmax.f32 %v883, 0.0
    %v910 = vmax.f32 %v888, 0.0
    %v911 = vmax.f32 %v893, 0.0
    %v912 = vld [vmem:[%s3] sm:$0xff]
    %v913 = vld [vmem:[%s3 + $0x8] sm:$0xff]
    %v914 = vld [vmem:[%s3 + $0x10] sm:$0xff]
    %v915 = vld [vmem:[%s3 + $0x18] sm:$0xff]
    %v916 = vld [vmem:[%s3 + $0x20] sm:$0xff]
    %v917 = vld [vmem:[%s3 + $0x28] sm:$0xff]
    %v918 = vld [vmem:[%s3 + $0x30] sm:$0xff]
    %v919 = vld [vmem:[%s3 + $0x38] sm:$0xff]
    %v920 = vld [vmem:[%s3 + $0x40] sm:$0xff]
    %v921 = vld [vmem:[%s3 + $0x48] sm:$0xff]
    %v922 = vld [vmem:[%s3 + $0x50] sm:$0xff]
    %v923 = vld [vmem:[%s3 + $0x58] sm:$0xff]
    %v924 = vld [vmem:[%s3 + $0x60] sm:$0xff]
    %v925 = vld [vmem:[%s3 + $0x68] sm:$0xff]
    %v926 = vld [vmem:[%s3 + $0x70] sm:$0xff]
    %v927 = vld [vmem:[%s3 + $0x78] sm:$0xff]
    %929 = vset.pattern.permute.xlu0 0
    %930 = vperm.xlu0 %929, %v72
    %v931 = vpop.permute.xlu0 %930
    %934 = vset.pattern.permute.xlu0 0
    %935 = vperm.xlu0 %934, %v73
    %v936 = vpop.permute.xlu0 %935
    %939 = vset.pattern.permute.xlu0 0
    %940 = vperm.xlu0 %939, %v74
    %v941 = vpop.permute.xlu0 %940
    %944 = vset.pattern.permute.xlu0 0
    %945 = vperm.xlu0 %944, %v75
    %v946 = vpop.permute.xlu0 %945
    %949 = vset.pattern.permute.xlu0 0
    %950 = vperm.xlu0 %949, %v76
    %v951 = vpop.permute.xlu0 %950
    %954 = vset.pattern.permute.xlu0 0
    %955 = vperm.xlu0 %954, %v77
    %v956 = vpop.permute.xlu0 %955
    %959 = vset.pattern.permute.xlu0 0
    %960 = vperm.xlu0 %959, %v78
    %v961 = vpop.permute.xlu0 %960
    %964 = vset.pattern.permute.xlu0 0
    %965 = vperm.xlu0 %964, %v79
    %v966 = vpop.permute.xlu0 %965
    %969 = vset.pattern.permute.xlu0 0
    %970 = vperm.xlu0 %969, %v80
    %v971 = vpop.permute.xlu0 %970
    %974 = vset.pattern.permute.xlu0 0
    %975 = vperm.xlu0 %974, %v81
    %v976 = vpop.permute.xlu0 %975
    %979 = vset.pattern.permute.xlu0 0
    %980 = vperm.xlu0 %979, %v82
    %v981 = vpop.permute.xlu0 %980
    %984 = vset.pattern.permute.xlu0 0
    %985 = vperm.xlu0 %984, %v83
    %v986 = vpop.permute.xlu0 %985
    %989 = vset.pattern.permute.xlu0 0
    %990 = vperm.xlu0 %989, %v84
    %v991 = vpop.permute.xlu0 %990
    %994 = vset.pattern.permute.xlu0 0
    %995 = vperm.xlu0 %994, %v85
    %v996 = vpop.permute.xlu0 %995
    %999 = vset.pattern.permute.xlu0 0
    %1000 = vperm.xlu0 %999, %v86
    %v1001 = vpop.permute.xlu0 %1000
    %1004 = vset.pattern.permute.xlu0 0
    %1005 = vperm.xlu0 %1004, %v87
    %v1006 = vpop.permute.xlu0 %1005
    %1008 = vmatprep.subr.mxu0 0.0
    %1009 = vmatpush1.msra.mxu0 %v896
    %1010 = vmatprep.subr.mxu0 0.0
    %1011 = vmatpush1.msra.mxu0 %v897
    %1012 = vmatprep.subr.mxu0 0.0
    %1013 = vmatpush1.msra.mxu0 %v898
    %1014 = vmatprep.subr.mxu0 0.0
    %1015 = vmatpush1.msra.mxu0 %v899
    %1016 = vmatprep.subr.mxu0 0.0
    %1017 = vmatpush1.msra.mxu0 %v900
    %1018 = vmatprep.subr.mxu0 0.0
    %1019 = vmatpush1.msra.mxu0 %v901
    %1020 = vmatprep.subr.mxu0 0.0
    %1021 = vmatpush1.msra.mxu0 %v902
    %1022 = vmatprep.subr.mxu0 0.0
    %1023 = vmatpush1.msra.mxu0 %v903
    %1024 = vmatprep.subr.mxu0 0.0
    %1025 = vmatpush1.msra.mxu0 %v904
    %1026 = vmatprep.subr.mxu0 0.0
    %1027 = vmatpush1.msra.mxu0 %v905
    %1028 = vmatprep.subr.mxu0 0.0
    %1029 = vmatpush1.msra.mxu0 %v906
    %1030 = vmatprep.subr.mxu0 0.0
    %1031 = vmatpush1.msra.mxu0 %v907
    %1032 = vmatprep.subr.mxu0 0.0
    %1033 = vmatpush1.msra.mxu0 %v908
    %1034 = vmatprep.subr.mxu0 0.0
    %1035 = vmatpush1.msra.mxu0 %v909
    %1036 = vmatprep.subr.mxu0 0.0
    %1037 = vmatpush1.msra.mxu0 %v910
    %1038 = vmatprep.subr.mxu0 0.0
    %1039 = vmatpush1.msra.mxu0 %v911
    %1040 = vmatprep.subr.mxu0 0.0
    %1041 = vmatpush1.msra.mxu0 0.0
    %1042 = vmatprep.subr.mxu0 0.0
    %1043 = vmatpush1.msra.mxu0 0.0
    %1044 = vmatprep.subr.mxu0 0.0
    %1045 = vmatpush1.msra.mxu0 0.0
    %1046 = vmatprep.subr.mxu0 0.0
    %1047 = vmatpush1.msra.mxu0 0.0
    %1048 = vmatprep.subr.mxu0 0.0
    %1049 = vmatpush1.msra.mxu0 0.0
    %1050 = vmatprep.subr.mxu0 0.0
    %1051 = vmatpush1.msra.mxu0 0.0
    %1052 = vmatprep.subr.mxu0 0.0
    %1053 = vmatpush1.msra.mxu0 0.0
    %1054 = vmatprep.subr.mxu0 0.0
    %1055 = vmatpush1.msra.mxu0 0.0
    %1056 = vmatprep.subr.mxu0 0.0
    %1057 = vmatpush1.msra.mxu0 0.0
    %1058 = vmatprep.subr.mxu0 0.0
    %1059 = vmatpush1.msra.mxu0 0.0
    %1060 = vmatprep.subr.mxu0 0.0
    %1061 = vmatpush1.msra.mxu0 0.0
    %1062 = vmatprep.subr.mxu0 0.0
    %1063 = vmatpush1.msra.mxu0 0.0
    %1064 = vmatprep.subr.mxu0 0.0
    %1065 = vmatpush1.msra.mxu0 0.0
    %1066 = vmatprep.subr.mxu0 0.0
    %1067 = vmatpush1.msra.mxu0 0.0
    %1068 = vmatprep.subr.mxu0 0.0
    %1069 = vmatpush1.msra.mxu0 0.0
    %1070 = vmatprep.subr.mxu0 0.0
    %1071 = vmatpush1.msra.mxu0 0.0
    %1072 = vmatprep.mubr.f32.mxu0 0.0
    %1073 = vmatmul.mubr.f32.gmra.mrb[0].mxu0 %v912
    %v1074 = vpop.f32.mrb[0].mxu0
    %v1075 = vadd.f32 %v931, %v1074
    %v1076 = vpop.f32.mrb[0].mxu0
    %1077 = vmatprep.mubr.f32.mxu0 0.0
    %1078 = vmatmul.mubr.f32.gmra.mrb[0].mxu0 %v913
    %v1079 = vpop.f32.mrb[0].mxu0
    %v1080 = vadd.f32 %v936, %v1079
    %v1081 = vpop.f32.mrb[0].mxu0
    %1082 = vmatprep.mubr.f32.mxu0 0.0
    %1083 = vmatmul.mubr.f32.gmra.mrb[0].mxu0 %v914
    %v1084 = vpop.f32.mrb[0].mxu0
    %v1085 = vadd.f32 %v941, %v1084
    %v1086 = vpop.f32.mrb[0].mxu0
    %1087 = vmatprep.mubr.f32.mxu0 0.0
    %1088 = vmatmul.mubr.f32.gmra.mrb[0].mxu0 %v915
    %v1089 = vpop.f32.mrb[0].mxu0
    %v1090 = vadd.f32 %v946, %v1089
    %v1091 = vpop.f32.mrb[0].mxu0
    %1092 = vmatprep.mubr.f32.mxu0 0.0
    %1093 = vmatmul.mubr.f32.gmra.mrb[0].mxu0 %v916
    %v1094 = vpop.f32.mrb[0].mxu0
    %v1095 = vadd.f32 %v951, %v1094
    %v1096 = vpop.f32.mrb[0].mxu0
    %1097 = vmatprep.mubr.f32.mxu0 0.0
    %1098 = vmatmul.mubr.f32.gmra.mrb[0].mxu0 %v917
    %v1099 = vpop.f32.mrb[0].mxu0
    %v1100 = vadd.f32 %v956, %v1099
    %v1101 = vpop.f32.mrb[0].mxu0
    %1102 = vmatprep.mubr.f32.mxu0 0.0
    %1103 = vmatmul.mubr.f32.gmra.mrb[0].mxu0 %v918
    %v1104 = vpop.f32.mrb[0].mxu0
    %v1105 = vadd.f32 %v961, %v1104
    %v1106 = vpop.f32.mrb[0].mxu0
    %1107 = vmatprep.mubr.f32.mxu0 0.0
    %1108 = vmatmul.mubr.f32.gmra.mrb[0].mxu0 %v919
    %v1109 = vpop.f32.mrb[0].mxu0
    %v1110 = vadd.f32 %v966, %v1109
    %v1111 = vpop.f32.mrb[0].mxu0
    %1112 = vmatprep.mubr.f32.mxu0 0.0
    %1113 = vmatmul.mubr.f32.gmra.mrb[0].mxu0 %v920
    %v1114 = vpop.f32.mrb[0].mxu0
    %v1115 = vadd.f32 %v971, %v1114
    %v1116 = vpop.f32.mrb[0].mxu0
    %1117 = vmatprep.mubr.f32.mxu0 0.0
    %1118 = vmatmul.mubr.f32.gmra.mrb[0].mxu0 %v921
    %v1119 = vpop.f32.mrb[0].mxu0
    %v1120 = vadd.f32 %v976, %v1119
    %v1121 = vpop.f32.mrb[0].mxu0
    %1122 = vmatprep.mubr.f32.mxu0 0.0
    %1123 = vmatmul.mubr.f32.gmra.mrb[0].mxu0 %v922
    %v1124 = vpop.f32.mrb[0].mxu0
    %v1125 = vadd.f32 %v981, %v1124
    %v1126 = vpop.f32.mrb[0].mxu0
    %1127 = vmatprep.mubr.f32.mxu0 0.0
    %1128 = vmatmul.mubr.f32.gmra.mrb[0].mxu0 %v923
    %v1129 = vpop.f32.mrb[0].mxu0
    %v1130 = vadd.f32 %v986, %v1129
    %v1131 = vpop.f32.mrb[0].mxu0
    %1132 = vmatprep.mubr.f32.mxu0 0.0
    %1133 = vmatmul.mubr.f32.gmra.mrb[0].mxu0 %v924
    %v1134 = vpop.f32.mrb[0].mxu0
    %v1135 = vadd.f32 %v991, %v1134
    %v1136 = vpop.f32.mrb[0].mxu0
    %1137 = vmatprep.mubr.f32.mxu0 0.0
    %1138 = vmatmul.mubr.f32.gmra.mrb[0].mxu0 %v925
    %v1139 = vpop.f32.mrb[0].mxu0
    %v1140 = vadd.f32 %v996, %v1139
    %v1141 = vpop.f32.mrb[0].mxu0
    %1142 = vmatprep.mubr.f32.mxu0 0.0
    %1143 = vmatmul.mubr.f32.gmra.mrb[0].mxu0 %v926
    %v1144 = vpop.f32.mrb[0].mxu0
    %v1145 = vadd.f32 %v1001, %v1144
    %v1146 = vpop.f32.mrb[0].mxu0
    %1147 = vmatprep.mubr.f32.mxu0 0.0
    %1148 = vmatmul.mubr.f32.gmra.mrb[0].mxu0 %v927
    %v1149 = vpop.f32.mrb[0].mxu0
    %v1150 = vadd.f32 %v1006, %v1149
    %v1151 = vpop.f32.mrb[0].mxu0
    %1152 = vdwg.mxu0
    %v1153 = vmax.f32 %v1075, 0.0
    %v1154 = vmax.f32 %v1080, 0.0
    %v1155 = vmax.f32 %v1085, 0.0
    %v1156 = vmax.f32 %v1090, 0.0
    %v1157 = vmax.f32 %v1095, 0.0
    %v1158 = vmax.f32 %v1100, 0.0
    %v1159 = vmax.f32 %v1105, 0.0
    %v1160 = vmax.f32 %v1110, 0.0
    %v1161 = vmax.f32 %v1115, 0.0
    %v1162 = vmax.f32 %v1120, 0.0
    %v1163 = vmax.f32 %v1125, 0.0
    %v1164 = vmax.f32 %v1130, 0.0
    %v1165 = vmax.f32 %v1135, 0.0
    %v1166 = vmax.f32 %v1140, 0.0
    %v1167 = vmax.f32 %v1145, 0.0
    %v1168 = vmax.f32 %v1150, 0.0
    %v1169 = vld [vmem:[%s4] sm:$0x3]
    %1171 = vset.pattern.permute.xlu0 0
    %1172 = vperm.xlu0 %1171, %v88
    %v1173 = vpop.permute.xlu0 %1172
    %1175 = vmatprep.subr.mxu0 0.0
    %1176 = vmatpush1.msra.mxu0 %v1153
    %1177 = vmatprep.subr.mxu0 0.0
    %1178 = vmatpush1.msra.mxu0 %v1154
    %1179 = vmatprep.subr.mxu0 0.0
    %1180 = vmatpush1.msra.mxu0 %v1155
    %1181 = vmatprep.subr.mxu0 0.0
    %1182 = vmatpush1.msra.mxu0 %v1156
    %1183 = vmatprep.subr.mxu0 0.0
    %1184 = vmatpush1.msra.mxu0 %v1157
    %1185 = vmatprep.subr.mxu0 0.0
    %1186 = vmatpush1.msra.mxu0 %v1158
    %1187 = vmatprep.subr.mxu0 0.0
    %1188 = vmatpush1.msra.mxu0 %v1159
    %1189 = vmatprep.subr.mxu0 0.0
    %1190 = vmatpush1.msra.mxu0 %v1160
    %1191 = vmatprep.subr.mxu0 0.0
    %1192 = vmatpush1.msra.mxu0 %v1161
    %1193 = vmatprep.subr.mxu0 0.0
    %1194 = vmatpush1.msra.mxu0 %v1162
    %1195 = vmatprep.subr.mxu0 0.0
    %1196 = vmatpush1.msra.mxu0 %v1163
    %1197 = vmatprep.subr.mxu0 0.0
    %1198 = vmatpush1.msra.mxu0 %v1164
    %1199 = vmatprep.subr.mxu0 0.0
    %1200 = vmatpush1.msra.mxu0 %v1165
    %1201 = vmatprep.subr.mxu0 0.0
    %1202 = vmatpush1.msra.mxu0 %v1166
    %1203 = vmatprep.subr.mxu0 0.0
    %1204 = vmatpush1.msra.mxu0 %v1167
    %1205 = vmatprep.subr.mxu0 0.0
    %1206 = vmatpush1.msra.mxu0 %v1168
    %1207 = vmatprep.subr.mxu0 0.0
    %1208 = vmatpush1.msra.mxu0 0.0
    %1209 = vmatprep.subr.mxu0 0.0
    %1210 = vmatpush1.msra.mxu0 0.0
    %1211 = vmatprep.subr.mxu0 0.0
    %1212 = vmatpush1.msra.mxu0 0.0
    %1213 = vmatprep.subr.mxu0 0.0
    %1214 = vmatpush1.msra.mxu0 0.0
    %1215 = vmatprep.subr.mxu0 0.0
    %1216 = vmatpush1.msra.mxu0 0.0
    %1217 = vmatprep.subr.mxu0 0.0
    %1218 = vmatpush1.msra.mxu0 0.0
    %1219 = vmatprep.subr.mxu0 0.0
    %1220 = vmatpush1.msra.mxu0 0.0
    %1221 = vmatprep.subr.mxu0 0.0
    %1222 = vmatpush1.msra.mxu0 0.0
    %1223 = vmatprep.subr.mxu0 0.0
    %1224 = vmatpush1.msra.mxu0 0.0
    %1225 = vmatprep.subr.mxu0 0.0
    %1226 = vmatpush1.msra.mxu0 0.0
    %1227 = vmatprep.subr.mxu0 0.0
    %1228 = vmatpush1.msra.mxu0 0.0
    %1229 = vmatprep.subr.mxu0 0.0
    %1230 = vmatpush1.msra.mxu0 0.0
    %1231 = vmatprep.subr.mxu0 0.0
    %1232 = vmatpush1.msra.mxu0 0.0
    %1233 = vmatprep.subr.mxu0 0.0
    %1234 = vmatpush1.msra.mxu0 0.0
    %1235 = vmatprep.subr.mxu0 0.0
    %1236 = vmatpush1.msra.mxu0 0.0
    %1237 = vmatprep.subr.mxu0 0.0
    %1238 = vmatpush1.msra.mxu0 0.0
    %1239 = vmatprep.mubr.f32.mxu0 0.0
    %1240 = vmatmul.mubr.f32.gmra.mrb[0].mxu0 %v1169
    %v1241 = vpop.f32.mrb[0].mxu0
    %v1242 = vadd.f32 %v1173, %v1241
    %v1243 = vpop.f32.mrb[0].mxu0
    %1244 = vdwg.mxu0
    %vm1245 = vcmask 58368
    %1246 = vst.msk [vmem:[#allocation2] sm:$0x3] %vm1245, %v1242
    // Predicated region
    $region26: #{tpu_custom_call.1} parent=1 // pred_check
      _
    $region27: #{tpu_custom_call.1} parent=1 // pred_check_branch
      %1248 = sbr.rel (0) target = $region29
    $region28: #{tpu_custom_call.1} parent=1 // pred_region
      %s1250 = ssub.s32 32, 32
      %1251 = vsyncadd [#allocation3], %s1250
      %s1253 = sshll.u32 [#allocation2], 4
      %s1254 = int_to_ptr.vmem [resolvable:$true] %s1253
      %1256 = dma.vmem_to_hbm [thread:$0]  %s1254, 32, %s6, [#allocation3]
    $region29: #{tpu_custom_call.1} parent=1 // pred_fallthru
      _
    // Predicated region
    $region30: #{tpu_custom_call.1} parent=1 // pred_check
      _
    $region31: #{tpu_custom_call.1} parent=1 // pred_check_branch
      %1258 = sbr.rel (0) target = $region33
    $region32: #{tpu_custom_call.1} parent=1 // pred_region
      %1259 = dma.done [#allocation3], 32
    $region33: #{tpu_custom_call.1} parent=1 // pred_fallthru
      _
    %1260 = vsyncpa [#allocation3], 1

</llo_original>
